<compile_context>
chip_gen: v5e
topology: v5e:2x2
jax: 0.10.0
libtpu: 0.0.40
codegen_flags: <defaults>
</compile_context>

<pallas_src>
import jax
import jax.numpy as jnp
from jax.experimental import pallas as pl
from jax.experimental.pallas import tpu as pltpu


_TINY_TOTAL_BYTES = 2 * 1024 * 1024   # below this, do the whole add in one grid step


def _pos_add_kernel(x_ref, pos_ref, o_ref):
    # x_ref: (bB, tS, D), pos_ref: (tS, D), o_ref: (bB, tS, D) in the promoted
    # output dtype.  Promoting both operands to o_ref.dtype reproduces torch /
    # numpy type promotion for `x + pos`; the casts are free VPU work on a
    # memory-bound kernel.  Broadcasting (bB,tS,D)+(tS,D) is the per-batch add.
    o_ref[...] = x_ref[...].astype(o_ref.dtype) + pos_ref[...].astype(o_ref.dtype)


def _sublane_multiple(dtype) -> int:
    # f32 -> 8 sublane rows, bf16 -> 16, int8/fp8 -> 32 (sub-32-bit packing).
    return max(8, 32 // jnp.dtype(dtype).itemsize)


def _generation_budgets():
    """(max_block_bytes, vmem_limit_bytes) sized from the chip's VMEM capacity.

    The try/except only picks a conservative default budget when the hardware
    query is unavailable; it never masks kernel lowering or compile errors.
    """
    try:
        vmem_cap = int(pltpu.get_tpu_info().vmem_capacity_bytes)
    except Exception:
        vmem_cap = 64 * 1024 * 1024          # conservative: assume v7x-sized VMEM
    if vmem_cap >= 96 * 1024 * 1024:         # v5e / v6e: 128 MiB VMEM
        return 8 * 1024 * 1024, 64 * 1024 * 1024
    return 4 * 1024 * 1024, 32 * 1024 * 1024  # v7x: 64 MiB VMEM (32 MiB scoped)


def _choose_s_tile(S, row_bytes, sublane, max_block_bytes):
    """cdiv-style S tile: largest multiple of `sublane` whose (ts, D) block fits
    under max_block_bytes.  No divisor requirement (no perf cliffs for prime-ish
    S); the ragged last block is handled/masked by Pallas."""
    if S * row_bytes <= max_block_bytes:
        return S
    ts = (max_block_bytes // row_bytes) // sublane * sublane
    return int(min(max(ts, sublane), S))


def position_embedding_learned(x, embed_weight, *, donate_x=False,
                               max_block_bytes=None, vmem_limit_bytes=None):
    """Forward of PositionEmbeddingLearned: x + embed_weight[:S], over batch.

    x:            [B, S, D]
    embed_weight: [seq_len, D] learned table (seq_len >= S, D == num_pos_feats)
    donate_x:     alias the output onto x when dtypes match (caller must donate)
    max_block_bytes / vmem_limit_bytes: test/tuning overrides; default is
                  generation-aware (see _generation_budgets).
    """
    B, S, D = x.shape
    seq_len, Dw = embed_weight.shape
    if Dw != D:
        raise ValueError(f"feature dim mismatch: x has D={D}, table has D={Dw}")
    if S > seq_len:
        # nn.Embedding would fail on out-of-range indices; don't truncate silently.
        raise ValueError(f"sequence length {S} exceeds embedding rows {seq_len}")

    out_dtype = jnp.promote_types(x.dtype, embed_weight.dtype)
    pos = embed_weight[:S, :]                     # static slice == arange lookup

    gen_block, gen_vmem = _generation_budgets()
    if max_block_bytes is None:
        max_block_bytes = gen_block
    if vmem_limit_bytes is None:
        vmem_limit_bytes = gen_vmem

    itemsize = max(jnp.dtype(x.dtype).itemsize,
                   jnp.dtype(pos.dtype).itemsize,
                   jnp.dtype(out_dtype).itemsize)
    row_bytes = D * itemsize
    per_batch_bytes = S * row_bytes
    total_bytes = B * per_batch_bytes
    sublane = max(_sublane_multiple(x.dtype),
                  _sublane_multiple(pos.dtype),
                  _sublane_multiple(out_dtype))

    alias_x = bool(donate_x) and jnp.dtype(out_dtype) == jnp.dtype(x.dtype)

    if total_bytes <= _TINY_TOTAL_BYTES:
        # One grid step: avoid per-step pipeline overhead on small shapes.
        grid = (1,)
        x_spec = pl.BlockSpec((B, S, D), lambda i: (0, 0, 0))
        out_spec = pl.BlockSpec((B, S, D), lambda i: (0, 0, 0))
        pos_spec = pl.BlockSpec((S, D), lambda i: (0, 0))
        dim_sem = ("arbitrary",)
    elif per_batch_bytes <= max_block_bytes:
        # Small-S / large-B: pack multiple batch elements per block so each DMA
        # is multi-MiB, not tens of KiB.  pos block index is grid-invariant.
        bB = int(max(1, min(B, max_block_bytes // per_batch_bytes)))
        nb = pl.cdiv(B, bB)
        if nb < 2 and B >= 2:
            # Keep >=2 parallel steps so both v7x TensorCores get work.
            bB = pl.cdiv(B, 2)
            nb = pl.cdiv(B, bB)
        grid = (nb,)
        x_spec = pl.BlockSpec((bB, S, D), lambda b: (b, 0, 0))
        out_spec = pl.BlockSpec((bB, S, D), lambda b: (b, 0, 0))
        pos_spec = pl.BlockSpec((S, D), lambda b: (0, 0))
        dim_sem = ("parallel",)
    else:
        # Large S: tile S (cdiv tiling, ragged last block masked by Pallas).
        # s is the OUTER axis so the pos block only changes every B steps.
        ts = _choose_s_tile(S, row_bytes, sublane, max_block_bytes)
        grid = (pl.cdiv(S, ts), B)
        x_spec = pl.BlockSpec((1, ts, D), lambda s, b: (b, s, 0))
        out_spec = pl.BlockSpec((1, ts, D), lambda s, b: (b, s, 0))
        pos_spec = pl.BlockSpec((ts, D), lambda s, b: (s, 0))
        dim_sem = ("parallel", "parallel")

    call_kwargs = {"input_output_aliases": {0: 0}} if alias_x else {}
    return pl.pallas_call(
        _pos_add_kernel,
        out_shape=jax.ShapeDtypeStruct((B, S, D), out_dtype),
        grid_spec=pltpu.PrefetchScalarGridSpec(
            num_scalar_prefetch=0,
            grid=grid,
            in_specs=[x_spec, pos_spec],
            out_specs=out_spec,
        ),
        compiler_params=pltpu.CompilerParams(
            dimension_semantics=dim_sem,
            vmem_limit_bytes=vmem_limit_bytes,
        ),
        **call_kwargs,
    )(x, pos)


if __name__ == "__main__":
    key = jax.random.PRNGKey(0)
    keys = jax.random.split(key, 8)

    # --- Test 1: module defaults (seq_len=27, num_pos_feats=512), small x (single step) ---
    seq_len, D = 27, 512
    B, S = 2, 16
    # nn.init.uniform_ -> U[0, 1) over the embedding weight, deterministic here.
    w1 = jax.random.uniform(keys[0], (seq_len, D), dtype=jnp.float32)
    x1 = jax.random.normal(keys[1], (B, S, D), dtype=jnp.float32)
    out1 = jax.block_until_ready(position_embedding_learned(x1, w1))
    ref1 = x1 + w1[:S, :][None]
    assert out1.shape == (B, S, D) and out1.dtype == jnp.float32
    assert jnp.allclose(out1, ref1, atol=1e-6), "mismatch vs reference (tiny path)"

    # --- Test 2: batch-packed path (B large, S = module default 27) ---
    B2, S2 = 64, 27
    w2 = jax.random.uniform(keys[2], (seq_len, D), dtype=jnp.float32)
    x2 = jax.random.normal(keys[3], (B2, S2, D), dtype=jnp.float32)
    out2 = jax.block_until_ready(position_embedding_learned(x2, w2))
    ref2 = x2 + w2[:S2, :][None]
    assert out2.shape == (B2, S2, D)
    assert jnp.allclose(out2, ref2, atol=1e-6), "mismatch vs reference (batch-packed path)"

    # --- Test 3: tiled-S path with ragged (non-multiple-of-8) S; small forced block cap ---
    seq3, S3, B3 = 1003, 1003, 2
    w3 = jax.random.uniform(keys[4], (seq3, D), dtype=jnp.float32)
    x3 = jax.random.normal(keys[5], (B3, S3, D), dtype=jnp.float32)
    out3 = jax.block_until_ready(
        position_embedding_learned(x3, w3, max_block_bytes=256 * 1024))
    ref3 = x3 + w3[:S3, :][None]
    assert out3.shape == (B3, S3, D)
    assert jnp.allclose(out3, ref3, atol=1e-6), "mismatch vs reference (tiled-S ragged path)"

    # --- Test 4: mixed dtype promotion (bf16 x + f32 table -> f32), torch semantics ---
    B4, S4 = 2, 27
    w4 = jax.random.uniform(keys[6], (seq_len, D), dtype=jnp.float32)
    x4 = jax.random.normal(keys[7], (B4, S4, D), dtype=jnp.bfloat16)
    out4 = jax.block_until_ready(position_embedding_learned(x4, w4))
    ref4 = x4.astype(jnp.float32) + w4[:S4, :][None]
    assert out4.dtype == jnp.float32
    assert jnp.allclose(out4, ref4, atol=1e-6), "mismatch vs reference (mixed-dtype path)"

    print("KERNEL_OK")
</pallas_src>

<mosaic_0001>
module attributes {stable_mosaic.version = 11 : i64} {
  func.func @_pos_add_kernel(%arg0: i32, %arg1: memref<2x16x512xf32, #tpu.memory_space<vmem>>, %arg2: memref<16x512xf32, #tpu.memory_space<vmem>>, %arg3: memref<2x16x512xf32, #tpu.memory_space<vmem>>) attributes {dimension_semantics = [#tpu.dimension_semantics<arbitrary>], iteration_bounds = array<i64: 1>, scalar_prefetch = 0 : i64, scratch_operands = 0 : i64, tpu.core_type = #tpu.core_type<tc>, window_params = [{pipeline_mode = #tpu.pipeline_mode<synchronous>, transform_indices = @transform_0, window_bounds = array<i64: 2, 16, 512>}, {pipeline_mode = #tpu.pipeline_mode<synchronous>, transform_indices = @transform_1, window_bounds = array<i64: 16, 512>}, {pipeline_mode = #tpu.pipeline_mode<synchronous>, transform_indices = @transform_2, window_bounds = array<i64: 2, 16, 512>}]} {
    %c0 = arith.constant 0 : index
    %c0_0 = arith.constant 0 : index
    %c0_1 = arith.constant 0 : index
    %0 = vector.load %arg1[%c0, %c0_0, %c0_1] : memref<2x16x512xf32, #tpu.memory_space<vmem>>, vector<2x16x512xf32>
    %c0_2 = arith.constant 0 : index
    %c0_3 = arith.constant 0 : index
    %1 = vector.load %arg2[%c0_2, %c0_3] : memref<16x512xf32, #tpu.memory_space<vmem>>, vector<16x512xf32>
    %2 = vector.shape_cast %1 : vector<16x512xf32> to vector<1x16x512xf32>
    %3 = vector.broadcast %2 : vector<1x16x512xf32> to vector<2x16x512xf32>
    %4 = arith.addf %0, %3 : vector<2x16x512xf32>
    %c0_4 = arith.constant 0 : index
    %c0_5 = arith.constant 0 : index
    %c0_6 = arith.constant 0 : index
    %5 = vector.load %arg3[%c0_4, %c0_5, %c0_6] : memref<2x16x512xf32, #tpu.memory_space<vmem>>, vector<2x16x512xf32>
    tpu.vector_store %arg3[%c0_4, %c0_5, %c0_6], %4 {strides = array<i32>} : memref<2x16x512xf32, #tpu.memory_space<vmem>>, vector<2x16x512xf32>,
    return
  }
  func.func @transform_0(%arg0: i32) -> (i32, i32, i32) {
    %c0_i32 = arith.constant 0 : i32
    %c0_i32_0 = arith.constant 0 : i32
    %c0_i32_1 = arith.constant 0 : i32
    %c0_i32_2 = arith.constant 0 : i32
    return %c0_i32, %c0_i32_0, %c0_i32_1 : i32, i32, i32
  }
  func.func @transform_1(%arg0: i32) -> (i32, i32) {
    %c0_i32 = arith.constant 0 : i32
    %c0_i32_0 = arith.constant 0 : i32
    %c0_i32_1 = arith.constant 0 : i32
    return %c0_i32, %c0_i32_0 : i32, i32
  }
  func.func @transform_2(%arg0: i32) -> (i32, i32, i32) {
    %c0_i32 = arith.constant 0 : i32
    %c0_i32_0 = arith.constant 0 : i32
    %c0_i32_1 = arith.constant 0 : i32
    %c0_i32_2 = arith.constant 0 : i32
    return %c0_i32, %c0_i32_0, %c0_i32_1 : i32, i32, i32
  }
}

</mosaic_0001>

<llo_original>
// kernel: tpu_custom_call.1
$region0: #{tpu_custom_call.1}
  #allocation0 [shape = 'u32[]', space=smem, size = 0x4, offset = 0x4, fixed_abs, tag = 'smem constant byte address 0x4 - core index']
  #allocation1 [shape = 'u32[72,128]{1,0:T(1,128)}', space=vmem, size = 0x9000, scoped, tag = 'internal scratch']
  %s0 = inlined_call_operand.hbm [shape: f32[2,16,512], index: 0, kind: input, shape index: {}]
  %s1 = inlined_call_operand.hbm [shape: f32[16,512], index: 1, kind: input, shape index: {}]
  %s2 = inlined_call_operand.hbm [shape: f32[2,16,512], index: 2, kind: output, shape index: {}]
  %s3 = sld [smem:[#allocation0]]
  $region26: #{tpu_custom_call.1} parent=0
    _
  %s5 = ssub.s32 1, %s3
  %s6 = scalar_select 0, %s5, %s3
  $region1: #{tpu_custom_call.1} parent=0
    #allocation2 [shape = 'u8[65536]{0}', space=vmem, size = 0x10000, scoped, tag = 'input window, operand 0, single buffered']
    #allocation3 [shape = 's32[1]{0}', space=sflag, size = 0x4, scoped, tag = 'scoped memory for tpu_custom_call.1']
    #allocation4 [shape = 's32[1]{0}', space=sflag, size = 0x4, scoped, tag = 'scoped memory for tpu_custom_call.1']
    #allocation5 [shape = 'u8[32768]{0}', space=vmem, size = 0x8000, scoped, tag = 'input window, operand 1, single buffered']
    #allocation6 [shape = 's32[1]{0}', space=sflag, size = 0x4, scoped, tag = 'scoped memory for tpu_custom_call.1']
    #allocation7 [shape = 'u8[65536]{0}', space=vmem, size = 0x10000, scoped, tag = 'output window, operand 0, single buffered']
    %7 = vsyncpa [#allocation3], 0
    %8 = vsyncpa [#allocation6], 0
    %9 = vsyncpa [#allocation4], 0
    // Predicated region
    $region2: #{tpu_custom_call.1} parent=1 // pred_check
      _
    $region3: #{tpu_custom_call.1} parent=1 // pred_check_branch
      %11 = sbr.rel (0) target = $region5
    $region4: #{tpu_custom_call.1} parent=1 // pred_region
      %13 = vsyncadd [#allocation3], 0
      %s14 = sshll.u32 %s0, 4
      %s15 = int_to_ptr.hbm [resolvable:$true] %s14
      %s16 = sshll.u32 [#allocation2], 4
      %s17 = int_to_ptr.vmem [resolvable:$true] %s16
      %22 = dma.hbm_to_vmem [thread:$0]  %s15, 2048, %s17, [#allocation3], 512, 512, 32
    $region5: #{tpu_custom_call.1} parent=1 // pred_fallthru
      _
    // Predicated region
    $region6: #{tpu_custom_call.1} parent=1 // pred_check
      _
    $region7: #{tpu_custom_call.1} parent=1 // pred_check_branch
      %24 = sbr.rel (0) target = $region9
    $region8: #{tpu_custom_call.1} parent=1 // pred_region
      %26 = vsyncadd [#allocation6], 0
      %s27 = sshll.u32 %s1, 4
      %s28 = int_to_ptr.hbm [resolvable:$true] %s27
      %s29 = sshll.u32 [#allocation5], 4
      %s30 = int_to_ptr.vmem [resolvable:$true] %s29
      %35 = dma.hbm_to_vmem [thread:$0]  %s28, 1024, %s30, [#allocation6], 512, 512, 32
    $region9: #{tpu_custom_call.1} parent=1 // pred_fallthru
      _
    // Predicated region
    $region10: #{tpu_custom_call.1} parent=1 // pred_check
      _
    $region11: #{tpu_custom_call.1} parent=1 // pred_check_branch
      %37 = sbr.rel (0) target = $region13
    $region12: #{tpu_custom_call.1} parent=1 // pred_region
      %39 = dma.done [#allocation3], 2048
    $region13: #{tpu_custom_call.1} parent=1 // pred_fallthru
      _
    // Predicated region
    $region14: #{tpu_custom_call.1} parent=1 // pred_check
      _
    $region15: #{tpu_custom_call.1} parent=1 // pred_check_branch
      %41 = sbr.rel (0) target = $region17
    $region16: #{tpu_custom_call.1} parent=1 // pred_region
      %43 = dma.done [#allocation6], 1024
    $region17: #{tpu_custom_call.1} parent=1 // pred_fallthru
      _
    %v44 = vld [vmem:[#allocation2] sm:$0xff]
    %v45 = vld [vmem:[#allocation2 + $0x8] sm:$0xff]
    %v46 = vld [vmem:[#allocation2 + $0x10] sm:$0xff]
    %v47 = vld [vmem:[#allocation2 + $0x18] sm:$0xff]
    %v48 = vld [vmem:[#allocation2 + $0x20] sm:$0xff]
    %v49 = vld [vmem:[#allocation2 + $0x28] sm:$0xff]
    %v50 = vld [vmem:[#allocation2 + $0x30] sm:$0xff]
    %v51 = vld [vmem:[#allocation2 + $0x38] sm:$0xff]
    %v52 = vld [vmem:[#allocation2 + $0x40] sm:$0xff]
    %v53 = vld [vmem:[#allocation2 + $0x48] sm:$0xff]
    %v54 = vld [vmem:[#allocation2 + $0x50] sm:$0xff]
    %v55 = vld [vmem:[#allocation2 + $0x58] sm:$0xff]
    %v56 = vld [vmem:[#allocation2 + $0x60] sm:$0xff]
    %v57 = vld [vmem:[#allocation2 + $0x68] sm:$0xff]
    %v58 = vld [vmem:[#allocation2 + $0x70] sm:$0xff]
    %v59 = vld [vmem:[#allocation2 + $0x78] sm:$0xff]
    %v60 = vld [vmem:[#allocation5] sm:$0xff]
    %v61 = vld [vmem:[#allocation5 + $0x8] sm:$0xff]
    %v62 = vld [vmem:[#allocation5 + $0x10] sm:$0xff]
    %v63 = vld [vmem:[#allocation5 + $0x18] sm:$0xff]
    %v64 = vld [vmem:[#allocation5 + $0x20] sm:$0xff]
    %v65 = vld [vmem:[#allocation5 + $0x28] sm:$0xff]
    %v66 = vld [vmem:[#allocation5 + $0x30] sm:$0xff]
    %v67 = vld [vmem:[#allocation5 + $0x38] sm:$0xff]
    %v68 = vadd.f32 %v44, %v60
    %v69 = vadd.f32 %v45, %v61
    %v70 = vadd.f32 %v46, %v62
    %v71 = vadd.f32 %v47, %v63
    %v72 = vadd.f32 %v48, %v64
    %v73 = vadd.f32 %v49, %v65
    %v74 = vadd.f32 %v50, %v66
    %v75 = vadd.f32 %v51, %v67
    %v76 = vadd.f32 %v52, %v60
    %v77 = vadd.f32 %v53, %v61
    %v78 = vadd.f32 %v54, %v62
    %v79 = vadd.f32 %v55, %v63
    %v80 = vadd.f32 %v56, %v64
    %v81 = vadd.f32 %v57, %v65
    %v82 = vadd.f32 %v58, %v66
    %v83 = vadd.f32 %v59, %v67
    %84 = vst [vmem:[#allocation7] sm:$0xff] %v68
    %85 = vst [vmem:[#allocation7 + $0x8] sm:$0xff] %v69
    %86 = vst [vmem:[#allocation7 + $0x10] sm:$0xff] %v70
    %87 = vst [vmem:[#allocation7 + $0x18] sm:$0xff] %v71
    %88 = vst [vmem:[#allocation7 + $0x20] sm:$0xff] %v72
    %89 = vst [vmem:[#allocation7 + $0x28] sm:$0xff] %v73
    %90 = vst [vmem:[#allocation7 + $0x30] sm:$0xff] %v74
    %91 = vst [vmem:[#allocation7 + $0x38] sm:$0xff] %v75
    %92 = vst [vmem:[#allocation7 + $0x40] sm:$0xff] %v76
    %93 = vst [vmem:[#allocation7 + $0x48] sm:$0xff] %v77
    %94 = vst [vmem:[#allocation7 + $0x50] sm:$0xff] %v78
    %95 = vst [vmem:[#allocation7 + $0x58] sm:$0xff] %v79
    %96 = vst [vmem:[#allocation7 + $0x60] sm:$0xff] %v80
    %97 = vst [vmem:[#allocation7 + $0x68] sm:$0xff] %v81
    %98 = vst [vmem:[#allocation7 + $0x70] sm:$0xff] %v82
    %99 = vst [vmem:[#allocation7 + $0x78] sm:$0xff] %v83
    // Predicated region
    $region18: #{tpu_custom_call.1} parent=1 // pred_check
      _
    $region19: #{tpu_custom_call.1} parent=1 // pred_check_branch
      %101 = sbr.rel (0) target = $region21
    $region20: #{tpu_custom_call.1} parent=1 // pred_region
      %103 = vsyncadd [#allocation4], 0
      %s104 = sshll.u32 [#allocation7], 4
      %s105 = int_to_ptr.vmem [resolvable:$true] %s104
      %s106 = sshll.u32 %s2, 4
      %s107 = int_to_ptr.hbm [resolvable:$true] %s106
      %112 = dma.vmem_to_hbm [thread:$0]  %s105, 2048, %s107, [#allocation4], 512, 512, 32
    $region21: #{tpu_custom_call.1} parent=1 // pred_fallthru
      _
    // Predicated region
    $region22: #{tpu_custom_call.1} parent=1 // pred_check
      _
    $region23: #{tpu_custom_call.1} parent=1 // pred_check_branch
      %114 = sbr.rel (0) target = $region25
    $region24: #{tpu_custom_call.1} parent=1 // pred_region
      %116 = dma.done [#allocation4], 2048
    $region25: #{tpu_custom_call.1} parent=1 // pred_fallthru
      _
    %117 = vsyncpa [#allocation3], 1
    %118 = vsyncpa [#allocation6], 1
    %119 = vsyncpa [#allocation4], 1

</llo_original>
